<compile_context>
chip_gen: v7x
topology: tpu7x:2x2x1
jax: 0.10.0
libtpu: 0.0.40
codegen_flags: <defaults>
</compile_context>

<pallas_src>
import functools

import jax
import jax.numpy as jnp
from jax.experimental import pallas as pl
from jax.experimental.pallas import tpu as pltpu

_LANE = 128             # TPU lane width: tail layers / output padded to this
_TARGET_BLOCK_B = 1024  # rows per grid step (multiple of 16; fits VMEM easily)


def _round_up(n, m):
    return (n + m - 1) // m * m


def _tensorcores_per_chip():
    """2 on v7x, 1 on v5e/v6e (used only for block_b policy)."""
    try:
        kind = jax.devices()[0].device_kind.lower()
    except Exception:
        return 1
    return 2 if "v7" in kind else 1


def mlp_kernel(x_ref, w1_ref, b1_ref, w2_ref, b2_ref, w3_ref, b3_ref,
               w4_ref, b4_ref, o_ref):
    # Cast the x tile to bf16 in-kernel (input may arrive f32 or bf16).
    x = x_ref[...].astype(jnp.bfloat16)
    # fc1 + ReLU   (bf16 x bf16 -> f32 accumulate on the MXU)
    h = jnp.dot(x, w1_ref[...], preferred_element_type=jnp.float32)
    h = jnp.maximum(h + b1_ref[...], 0.0).astype(jnp.bfloat16)
    # fc2 + ReLU
    h = jnp.dot(h, w2_ref[...], preferred_element_type=jnp.float32)
    h = jnp.maximum(h + b2_ref[...], 0.0).astype(jnp.bfloat16)
    # fc3 + ReLU (out dim lane-padded 16 -> 128; padded columns are exactly 0)
    h = jnp.dot(h, w3_ref[...], preferred_element_type=jnp.float32)
    h = jnp.maximum(h + b3_ref[...], 0.0).astype(jnp.bfloat16)
    # dropout: identity in inference mode
    # TODO(synk): training-mode dropout (pltpu.prng_random_bits mask) not needed for forward eval
    # out layer (lane-padded to 128 -> full-lane unmasked stores), bf16 store
    o = jnp.dot(h, w4_ref[...], preferred_element_type=jnp.float32)
    o_ref[...] = (o + b4_ref[...]).astype(o_ref.dtype)


@functools.partial(jax.jit, static_argnames=("n_classes",))
def simple_predictor_forward(x, prepared_params, n_classes=3):
    """x: [B, feature_dim] (f32 or bf16).  prepared_params: prepare_params()."""
    p = prepared_params
    B, feature_dim = x.shape
    n_tc = _tensorcores_per_chip()   # static at trace time

    # Batch tile: as big as practical (amortize ~0.35us/step grid overhead,
    # fill the MXU M dim).  Multiples of 16 so bf16 output blocks sit on
    # native (16,128) tiling.  Only shrink the tile on 2-TC chips (v7x).
    b16 = _round_up(B, 16)
    block_b = min(_TARGET_BLOCK_B, b16)
    if n_tc >= 2:
        if b16 >= 2048:
            # >= 2 grid steps per core -> DMA/writeback pipelining on both TCs
            block_b = min(block_b, 512)
        elif b16 >= 512:
            # >= 1 step per core
            block_b = min(block_b, _round_up((b16 + 1) // 2, 16))
    b_pad = _round_up(b16, block_b)

    # No full-pass cast in the wrapper; pad only if the batch is ragged.
    x_p = x if b_pad == B else jnp.pad(x, ((0, b_pad - B), (0, 0)))

    def rep(shape):
        # Whole-array (replicated) block: constant index_map -> weights are
        # DMA'd once and stay resident in VMEM across all grid steps.
        nd = len(shape)
        return pl.BlockSpec(shape, lambda i: (0,) * nd)

    grid = (b_pad // block_b,)
    out_padded = pl.pallas_call(
        mlp_kernel,
        out_shape=jax.ShapeDtypeStruct((b_pad, _LANE), jnp.bfloat16),
        grid_spec=pltpu.PrefetchScalarGridSpec(
            num_scalar_prefetch=0,
            grid=grid,
            in_specs=[
                pl.BlockSpec((block_b, feature_dim), lambda i: (i, 0)),  # x tile
                rep(p["w1"].shape), rep(p["b1"].shape),
                rep(p["w2"].shape), rep(p["b2"].shape),
                rep(p["w3"].shape), rep(p["b3"].shape),
                rep(p["w4"].shape), rep(p["b4"].shape),
            ],
            out_specs=pl.BlockSpec((block_b, _LANE), lambda i: (i, 0)),
        ),
        compiler_params=pltpu.CompilerParams(
            dimension_semantics=("parallel",)),
    )(x_p,
      p["w1"], p["b1"], p["w2"], p["b2"],
      p["w3"], p["b3"], p["w4"], p["b4"])

    # Tiny final slice (bf16 slab now -> half the HBM read vs f32); cast the
    # B x n_classes logits back to f32 to match the module's output dtype.
    return out_padded[:B, :n_classes].astype(jnp.float32)


def init_params(key, feature_dim=64, n_classes=3):
    """Deterministic init mimicking PyTorch Linear default U[-1/sqrt(in), 1/sqrt(in)].

    Weights stored as [in_features, out_features] (transpose of PyTorch's
    [out, in]) so the kernel computes x @ W + b directly on the MXU.
    """
    dims = [(feature_dim, 256), (256, 64), (64, 16), (16, n_classes)]
    params = {}
    for idx, (d_in, d_out) in enumerate(dims, start=1):
        key, kw, kb = jax.random.split(key, 3)
        bound = 1.0 / (d_in ** 0.5)
        params[f"w{idx}"] = jax.random.uniform(
            kw, (d_in, d_out), jnp.float32, minval=-bound, maxval=bound)
        # bias kept 2D [1, d_out] so it broadcasts cleanly over rows in VMEM
        params[f"b{idx}"] = jax.random.uniform(
            kb, (1, d_out), jnp.float32, minval=-bound, maxval=bound)
    return params


def prepare_params(params):
    """One-time: cast weights to bf16, zero-pad tail layers/output to 128 lanes."""
    def pad_cols(a, to):
        return jnp.pad(a, ((0, 0), (0, to - a.shape[1])))
    return {
        "w1": params["w1"].astype(jnp.bfloat16),                       # (F, 256)
        "b1": params["b1"].astype(jnp.float32),                        # (1, 256)
        "w2": params["w2"].astype(jnp.bfloat16),                       # (256, 64)
        "b2": params["b2"].astype(jnp.float32),                        # (1, 64)
        "w3": pad_cols(params["w3"], _LANE).astype(jnp.bfloat16),      # (64, 128)
        "b3": pad_cols(params["b3"], _LANE).astype(jnp.float32),       # (1, 128)
        "w4": jnp.pad(params["w4"],
                      ((0, _LANE - params["w4"].shape[0]),
                       (0, _LANE - params["w4"].shape[1]))
                      ).astype(jnp.bfloat16),                          # (128, 128)
        "b4": pad_cols(params["b4"], _LANE).astype(jnp.float32),       # (1, 128)
    }


def reference_forward(x, params):
    """Pure-JAX reference matching the kernel numerics (bf16 operands, f32 acc)."""
    def bf(a):
        return a.astype(jnp.bfloat16).astype(jnp.float32)
    h = jnp.maximum(bf(x) @ bf(params["w1"]) + params["b1"], 0.0)
    h = jnp.maximum(bf(h) @ bf(params["w2"]) + params["b2"], 0.0)
    h = jnp.maximum(bf(h) @ bf(params["w3"]) + params["b3"], 0.0)
    return bf(h) @ bf(params["w4"]) + params["b4"]


if __name__ == "__main__":
    key = jax.random.PRNGKey(0)
    key, kx = jax.random.split(key)

    B, feature_dim, n_classes = 8, 64, 3
    x = jax.random.normal(kx, (B, feature_dim), jnp.float32)
    params = init_params(key, feature_dim=feature_dim, n_classes=n_classes)
    prepared = prepare_params(params)

    out = simple_predictor_forward(x, prepared, n_classes=n_classes)
    out = jax.block_until_ready(out)

    ref = reference_forward(x, params)
    assert out.shape == (B, n_classes)
    assert jnp.allclose(out, ref, atol=5e-2, rtol=5e-2), "mismatch vs. reference"

    print("KERNEL_OK")
</pallas_src>

<mosaic_0001>
module attributes {stable_mosaic.version = 11 : i64} {
  func.func @mlp_kernel(%arg0: i32, %arg1: memref<16x64xf32, #tpu.memory_space<vmem>>, %arg2: memref<64x256xbf16, #tpu.memory_space<vmem>>, %arg3: memref<1x256xf32, #tpu.memory_space<vmem>>, %arg4: memref<256x64xbf16, #tpu.memory_space<vmem>>, %arg5: memref<1x64xf32, #tpu.memory_space<vmem>>, %arg6: memref<64x128xbf16, #tpu.memory_space<vmem>>, %arg7: memref<1x128xf32, #tpu.memory_space<vmem>>, %arg8: memref<128x128xbf16, #tpu.memory_space<vmem>>, %arg9: memref<1x128xf32, #tpu.memory_space<vmem>>, %arg10: memref<16x128xbf16, #tpu.memory_space<vmem>>) attributes {dimension_semantics = [#tpu.dimension_semantics<parallel>], iteration_bounds = array<i64: 1>, scalar_prefetch = 0 : i64, scratch_operands = 0 : i64, tpu.core_type = #tpu.core_type<tc>, window_params = [{transform_indices = @transform_0, window_bounds = array<i64: 16, 64>}, {pipeline_mode = #tpu.pipeline_mode<synchronous>, transform_indices = @transform_1, window_bounds = array<i64: 64, 256>}, {pipeline_mode = #tpu.pipeline_mode<synchronous>, transform_indices = @transform_2, window_bounds = array<i64: 1, 256>}, {pipeline_mode = #tpu.pipeline_mode<synchronous>, transform_indices = @transform_3, window_bounds = array<i64: 256, 64>}, {pipeline_mode = #tpu.pipeline_mode<synchronous>, transform_indices = @transform_4, window_bounds = array<i64: 1, 64>}, {pipeline_mode = #tpu.pipeline_mode<synchronous>, transform_indices = @transform_5, window_bounds = array<i64: 64, 128>}, {pipeline_mode = #tpu.pipeline_mode<synchronous>, transform_indices = @transform_6, window_bounds = array<i64: 1, 128>}, {pipeline_mode = #tpu.pipeline_mode<synchronous>, transform_indices = @transform_7, window_bounds = array<i64: 128, 128>}, {pipeline_mode = #tpu.pipeline_mode<synchronous>, transform_indices = @transform_8, window_bounds = array<i64: 1, 128>}, {transform_indices = @transform_9, window_bounds = array<i64: 16, 128>}]} {
    %c0 = arith.constant 0 : index
    %c0_0 = arith.constant 0 : index
    %0 = vector.load %arg1[%c0, %c0_0] : memref<16x64xf32, #tpu.memory_space<vmem>>, vector<16x64xf32>
    %1 = arith.truncf %0 : vector<16x64xf32> to vector<16x64xbf16>
    %c0_1 = arith.constant 0 : index
    %c0_2 = arith.constant 0 : index
    %2 = vector.load %arg2[%c0_1, %c0_2] : memref<64x256xbf16, #tpu.memory_space<vmem>>, vector<64x256xbf16>
    %cst = arith.constant dense<0.000000e+00> : vector<16x256xf32>
    %3 = tpu.matmul %1, %2, %cst {dimension_numbers = #tpu.dot_dimension_numbers<[1], [0], [0], [1], [0, 0, 1, 1], [], []>} : vector<16x64xbf16>, vector<64x256xbf16>, vector<16x256xf32> -> vector<16x256xf32>
    %c0_3 = arith.constant 0 : index
    %c0_4 = arith.constant 0 : index
    %4 = vector.load %arg3[%c0_3, %c0_4] : memref<1x256xf32, #tpu.memory_space<vmem>>, vector<1x256xf32>
    %5 = vector.broadcast %4 : vector<1x256xf32> to vector<16x256xf32>
    %6 = arith.addf %3, %5 : vector<16x256xf32>
    %cst_5 = arith.constant 0.000000e+00 : f32
    %7 = vector.broadcast %cst_5 : f32 to vector<16x256xf32>
    %8 = arith.maximumf %6, %7 : vector<16x256xf32>
    %9 = arith.truncf %8 : vector<16x256xf32> to vector<16x256xbf16>
    %c0_6 = arith.constant 0 : index
    %c0_7 = arith.constant 0 : index
    %10 = vector.load %arg4[%c0_6, %c0_7] : memref<256x64xbf16, #tpu.memory_space<vmem>>, vector<256x64xbf16>
    %cst_8 = arith.constant dense<0.000000e+00> : vector<16x64xf32>
    %11 = tpu.matmul %9, %10, %cst_8 {dimension_numbers = #tpu.dot_dimension_numbers<[1], [0], [0], [1], [0, 0, 1, 1], [], []>} : vector<16x256xbf16>, vector<256x64xbf16>, vector<16x64xf32> -> vector<16x64xf32>
    %c0_9 = arith.constant 0 : index
    %c0_10 = arith.constant 0 : index
    %12 = vector.load %arg5[%c0_9, %c0_10] : memref<1x64xf32, #tpu.memory_space<vmem>>, vector<1x64xf32>
    %13 = vector.broadcast %12 : vector<1x64xf32> to vector<16x64xf32>
    %14 = arith.addf %11, %13 : vector<16x64xf32>
    %cst_11 = arith.constant 0.000000e+00 : f32
    %15 = vector.broadcast %cst_11 : f32 to vector<16x64xf32>
    %16 = arith.maximumf %14, %15 : vector<16x64xf32>
    %17 = arith.truncf %16 : vector<16x64xf32> to vector<16x64xbf16>
    %c0_12 = arith.constant 0 : index
    %c0_13 = arith.constant 0 : index
    %18 = vector.load %arg6[%c0_12, %c0_13] : memref<64x128xbf16, #tpu.memory_space<vmem>>, vector<64x128xbf16>
    %cst_14 = arith.constant dense<0.000000e+00> : vector<16x128xf32>
    %19 = tpu.matmul %17, %18, %cst_14 {dimension_numbers = #tpu.dot_dimension_numbers<[1], [0], [0], [1], [0, 0, 1, 1], [], []>} : vector<16x64xbf16>, vector<64x128xbf16>, vector<16x128xf32> -> vector<16x128xf32>
    %c0_15 = arith.constant 0 : index
    %c0_16 = arith.constant 0 : index
    %20 = vector.load %arg7[%c0_15, %c0_16] : memref<1x128xf32, #tpu.memory_space<vmem>>, vector<1x128xf32>
    %21 = vector.broadcast %20 : vector<1x128xf32> to vector<16x128xf32>
    %22 = arith.addf %19, %21 : vector<16x128xf32>
    %cst_17 = arith.constant 0.000000e+00 : f32
    %23 = vector.broadcast %cst_17 : f32 to vector<16x128xf32>
    %24 = arith.maximumf %22, %23 : vector<16x128xf32>
    %25 = arith.truncf %24 : vector<16x128xf32> to vector<16x128xbf16>
    %c0_18 = arith.constant 0 : index
    %c0_19 = arith.constant 0 : index
    %26 = vector.load %arg8[%c0_18, %c0_19] : memref<128x128xbf16, #tpu.memory_space<vmem>>, vector<128x128xbf16>
    %cst_20 = arith.constant dense<0.000000e+00> : vector<16x128xf32>
    %27 = tpu.matmul %25, %26, %cst_20 {dimension_numbers = #tpu.dot_dimension_numbers<[1], [0], [0], [1], [0, 0, 1, 1], [], []>} : vector<16x128xbf16>, vector<128x128xbf16>, vector<16x128xf32> -> vector<16x128xf32>
    %c0_21 = arith.constant 0 : index
    %c0_22 = arith.constant 0 : index
    %28 = vector.load %arg9[%c0_21, %c0_22] : memref<1x128xf32, #tpu.memory_space<vmem>>, vector<1x128xf32>
    %29 = vector.broadcast %28 : vector<1x128xf32> to vector<16x128xf32>
    %30 = arith.addf %27, %29 : vector<16x128xf32>
    %31 = arith.truncf %30 : vector<16x128xf32> to vector<16x128xbf16>
    %c0_23 = arith.constant 0 : index
    %c0_24 = arith.constant 0 : index
    %32 = vector.load %arg10[%c0_23, %c0_24] : memref<16x128xbf16, #tpu.memory_space<vmem>>, vector<16x128xbf16>
    tpu.vector_store %arg10[%c0_23, %c0_24], %31 {strides = array<i32>} : memref<16x128xbf16, #tpu.memory_space<vmem>>, vector<16x128xbf16>,
    return
  }
  func.func @transform_0(%arg0: i32) -> (i32, i32) {
    %c0_i32 = arith.constant 0 : i32
    %c0_i32_0 = arith.constant 0 : i32
    return %arg0, %c0_i32 : i32, i32
  }
  func.func @transform_1(%arg0: i32) -> (i32, i32) {
    %c0_i32 = arith.constant 0 : i32
    %c0_i32_0 = arith.constant 0 : i32
    %c0_i32_1 = arith.constant 0 : i32
    return %c0_i32, %c0_i32_0 : i32, i32
  }
  func.func @transform_2(%arg0: i32) -> (i32, i32) {
    %c0_i32 = arith.constant 0 : i32
    %c0_i32_0 = arith.constant 0 : i32
    %c0_i32_1 = arith.constant 0 : i32
    return %c0_i32, %c0_i32_0 : i32, i32
  }
  func.func @transform_3(%arg0: i32) -> (i32, i32) {
    %c0_i32 = arith.constant 0 : i32
    %c0_i32_0 = arith.constant 0 : i32
    %c0_i32_1 = arith.constant 0 : i32
    return %c0_i32, %c0_i32_0 : i32, i32
  }
  func.func @transform_4(%arg0: i32) -> (i32, i32) {
    %c0_i32 = arith.constant 0 : i32
    %c0_i32_0 = arith.constant 0 : i32
    %c0_i32_1 = arith.constant 0 : i32
    return %c0_i32, %c0_i32_0 : i32, i32
  }
  func.func @transform_5(%arg0: i32) -> (i32, i32) {
    %c0_i32 = arith.constant 0 : i32
    %c0_i32_0 = arith.constant 0 : i32
    %c0_i32_1 = arith.constant 0 : i32
    return %c0_i32, %c0_i32_0 : i32, i32
  }
  func.func @transform_6(%arg0: i32) -> (i32, i32) {
    %c0_i32 = arith.constant 0 : i32
    %c0_i32_0 = arith.constant 0 : i32
    %c0_i32_1 = arith.constant 0 : i32
    return %c0_i32, %c0_i32_0 : i32, i32
  }
  func.func @transform_7(%arg0: i32) -> (i32, i32) {
    %c0_i32 = arith.constant 0 : i32
    %c0_i32_0 = arith.constant 0 : i32
    %c0_i32_1 = arith.constant 0 : i32
    return %c0_i32, %c0_i32_0 : i32, i32
  }
  func.func @transform_8(%arg0: i32) -> (i32, i32) {
    %c0_i32 = arith.constant 0 : i32
    %c0_i32_0 = arith.constant 0 : i32
    %c0_i32_1 = arith.constant 0 : i32
    return %c0_i32, %c0_i32_0 : i32, i32
  }
  func.func @transform_9(%arg0: i32) -> (i32, i32) {
    %c0_i32 = arith.constant 0 : i32
    %c0_i32_0 = arith.constant 0 : i32
    return %arg0, %c0_i32 : i32, i32
  }
}

</mosaic_0001>

<llo_original>
// kernel: simple_predictor_forward.1
$region0: #{simple_predictor_forward.1}
  #allocation0 [shape = 'u32[]', space=smem, size = 0x4, offset = 0x4, fixed_abs, tag = 'smem constant byte address 0x4 - core index']
  #allocation1 [shape = 'u32[144,128]{1,0:T(1,128)}', space=vmem, size = 0x12000, scoped, tag = 'internal scratch']
  %s0 = inlined_call_operand.vmem [shape: f32[16,64], index: 0, kind: input, shape index: {}]
  %s1 = inlined_call_operand.vmem [shape: bf16[64,256], index: 1, kind: input, shape index: {}]
  %s2 = inlined_call_operand.vmem [shape: f32[1,256], index: 2, kind: input, shape index: {}]
  %s3 = inlined_call_operand.vmem [shape: bf16[256,64], index: 3, kind: input, shape index: {}]
  %s4 = inlined_call_operand.vmem [shape: f32[1,64], index: 4, kind: input, shape index: {}]
  %s5 = inlined_call_operand.vmem [shape: bf16[64,128], index: 5, kind: input, shape index: {}]
  %s6 = inlined_call_operand.vmem [shape: f32[1,128], index: 6, kind: input, shape index: {}]
  %s7 = inlined_call_operand.vmem [shape: bf16[128,128], index: 7, kind: input, shape index: {}]
  %s8 = inlined_call_operand.vmem [shape: f32[1,128], index: 8, kind: input, shape index: {}]
  %s9 = inlined_call_operand.vmem [shape: bf16[16,128], index: 9, kind: output, shape index: {}]
  %s10 = sld [smem:[#allocation0]]
  $region46: #{simple_predictor_forward.1} parent=0
    _
  %s12 = ssub.s32 1, %s10
  %s13 = scalar_select 0, %s12, %s10
  // Predicated region
  $region2: #{simple_predictor_forward.1} parent=0 // pred_check
    _
  $region3: #{simple_predictor_forward.1} parent=0 // pred_check_branch
    %15 = sbr.rel (0) target = $region5
  $region4: #{simple_predictor_forward.1} parent=0 // pred_region
    _
  $region5: #{simple_predictor_forward.1} parent=0 // pred_fallthru
    _
  // Predicated region
  $region6: #{simple_predictor_forward.1} parent=0 // pred_check
    _
  $region7: #{simple_predictor_forward.1} parent=0 // pred_check_branch
    %17 = sbr.rel (0) target = $region9
  $region8: #{simple_predictor_forward.1} parent=0 // pred_region
    _
  $region9: #{simple_predictor_forward.1} parent=0 // pred_fallthru
    _
  // Predicated region
  $region10: #{simple_predictor_forward.1} parent=0 // pred_check
    _
  $region11: #{simple_predictor_forward.1} parent=0 // pred_check_branch
    %19 = sbr.rel (0) target = $region13
  $region12: #{simple_predictor_forward.1} parent=0 // pred_region
    _
  $region13: #{simple_predictor_forward.1} parent=0 // pred_fallthru
    _
  // Predicated region
  $region14: #{simple_predictor_forward.1} parent=0 // pred_check
    _
  $region15: #{simple_predictor_forward.1} parent=0 // pred_check_branch
    %21 = sbr.rel (0) target = $region17
  $region16: #{simple_predictor_forward.1} parent=0 // pred_region
    _
  $region17: #{simple_predictor_forward.1} parent=0 // pred_fallthru
    _
  // Predicated region
  $region18: #{simple_predictor_forward.1} parent=0 // pred_check
    _
  $region19: #{simple_predictor_forward.1} parent=0 // pred_check_branch
    %23 = sbr.rel (0) target = $region21
  $region20: #{simple_predictor_forward.1} parent=0 // pred_region
    _
  $region21: #{simple_predictor_forward.1} parent=0 // pred_fallthru
    _
  // Predicated region
  $region22: #{simple_predictor_forward.1} parent=0 // pred_check
    _
  $region23: #{simple_predictor_forward.1} parent=0 // pred_check_branch
    %25 = sbr.rel (0) target = $region25
  $region24: #{simple_predictor_forward.1} parent=0 // pred_region
    _
  $region25: #{simple_predictor_forward.1} parent=0 // pred_fallthru
    _
  // Predicated region
  $region26: #{simple_predictor_forward.1} parent=0 // pred_check
    _
  $region27: #{simple_predictor_forward.1} parent=0 // pred_check_branch
    %27 = sbr.rel (0) target = $region29
  $region28: #{simple_predictor_forward.1} parent=0 // pred_region
    _
  $region29: #{simple_predictor_forward.1} parent=0 // pred_fallthru
    _
  // Predicated region
  $region30: #{simple_predictor_forward.1} parent=0 // pred_check
    _
  $region31: #{simple_predictor_forward.1} parent=0 // pred_check_branch
    %29 = sbr.rel (0) target = $region33
  $region32: #{simple_predictor_forward.1} parent=0 // pred_region
    _
  $region33: #{simple_predictor_forward.1} parent=0 // pred_fallthru
    _
  // Predicated region
  $region34: #{simple_predictor_forward.1} parent=0 // pred_check
    _
  $region35: #{simple_predictor_forward.1} parent=0 // pred_check_branch
    %31 = sbr.rel (0) target = $region37
  $region36: #{simple_predictor_forward.1} parent=0 // pred_region
    _
  $region37: #{simple_predictor_forward.1} parent=0 // pred_fallthru
    _
  %v33 = vld [vmem:[%s0] sm:$0xff]
  %v34 = vld [vmem:[%s0 + $0x8] sm:$0xff]
  %v35 = vpack.c.bf16 %v34, %v33
  %v36 = vld [vmem:[%s1] sm:$0xff]
  %v37 = vld [vmem:[%s1 + $0x8] sm:$0xff]
  %v38 = vld [vmem:[%s1 + $0x10] sm:$0xff]
  %v39 = vld [vmem:[%s1 + $0x18] sm:$0xff]
  %v40 = vld [vmem:[%s1 + $0x20] sm:$0xff]
  %v41 = vld [vmem:[%s1 + $0x28] sm:$0xff]
  %v42 = vld [vmem:[%s1 + $0x30] sm:$0xff]
  %v43 = vld [vmem:[%s1 + $0x38] sm:$0xff]
  %v44 = vld [vmem:[%s2] sm:$0x3]
  %v46 = vlaneseq
  %v47 = vshrl.u32 %v46, 7
  %v48 = vsub.s32 0, %v47
  %v49 = vrot.slane %v44, %v48
  %v50 = vlaneseq
  %v51 = vshrl.u32 %v50, 7
  %v52 = vsub.s32 1, %v51
  %v53 = vrot.slane %v44, %v52
  %v64 = vunpack.c.l.b16 %v36
  %v65 = vunpack.c.h.b16 %v36
  %v66 = vunpack.c.l.b16 %v37
  %v67 = vunpack.c.h.b16 %v37
  %v68 = vunpack.c.l.b16 %v38
  %v69 = vunpack.c.h.b16 %v38
  %v70 = vunpack.c.l.b16 %v39
  %v71 = vunpack.c.h.b16 %v39
  %v72 = vunpack.c.l.b16 %v40
  %v73 = vunpack.c.h.b16 %v40
  %v74 = vunpack.c.l.b16 %v41
  %v75 = vunpack.c.h.b16 %v41
  %v76 = vunpack.c.l.b16 %v42
  %v77 = vunpack.c.h.b16 %v42
  %v78 = vunpack.c.l.b16 %v43
  %v79 = vunpack.c.h.b16 %v43
  %v80 = vpack.c.b16 %v66, %v64
  %v81 = vpack.c.b16 %v67, %v65
  %v82 = vpack.c.b16 %v70, %v68
  %v83 = vpack.c.b16 %v71, %v69
  %v84 = vpack.c.b16 %v74, %v72
  %v85 = vpack.c.b16 %v75, %v73
  %v86 = vpack.c.b16 %v78, %v76
  %v87 = vpack.c.b16 %v79, %v77
  %vm96 = vcmask 523264
  %v98 = vsel %vm96, %v35, 0
  %100 = vmatprep.subr.bf16.mxu0 %v81
  %101 = vmatpush1.bf16.msra.mxu0 %v80
  %102 = vmatprep.subr.bf16.mxu0 %v83
  %103 = vmatpush1.bf16.msra.mxu0 %v82
  %104 = vmatprep.subr.bf16.mxu0 %v85
  %105 = vmatpush1.bf16.msra.mxu0 %v84
  %106 = vmatprep.subr.bf16.mxu0 %v87
  %107 = vmatpush1.bf16.msra.mxu0 %v86
  %108 = vmatprep.subr.bf16.mxu0 0
  %109 = vmatpush1.bf16.msra.mxu0 0
  %110 = vmatprep.subr.bf16.mxu0 0
  %111 = vmatpush1.bf16.msra.mxu0 0
  %112 = vmatprep.subr.bf16.mxu0 0
  %113 = vmatpush1.bf16.msra.mxu0 0
  %114 = vmatprep.subr.bf16.mxu0 0
  %115 = vmatpush1.bf16.msra.mxu0 0
  %116 = vmatprep.subr.bf16.mxu0 0
  %117 = vmatpush1.bf16.msra.mxu0 0
  %118 = vmatprep.subr.bf16.mxu0 0
  %119 = vmatpush1.bf16.msra.mxu0 0
  %120 = vmatprep.subr.bf16.mxu0 0
  %121 = vmatpush1.bf16.msra.mxu0 0
  %122 = vmatprep.subr.bf16.mxu0 0
  %123 = vmatpush1.bf16.msra.mxu0 0
  %124 = vmatprep.subr.bf16.mxu0 0
  %125 = vmatpush1.bf16.msra.mxu0 0
  %126 = vmatprep.subr.bf16.mxu0 0
  %127 = vmatpush1.bf16.msra.mxu0 0
  %128 = vmatprep.subr.bf16.mxu0 0
  %129 = vmatpush1.bf16.msra.mxu0 0
  %130 = vmatprep.subr.bf16.mxu0 0
  %131 = vmatpush1.bf16.msra.mxu0 0
  %132 = vmatprep.mubr.bf16.mxu0 0
  %133 = vmatmul.mubr.bf16.gmra.mrb[0].mxu0 %v98
  %v134 = vpop.f32.mrb[0].mxu0
  %v135 = vadd.f32 %v49, %v134
  %v136 = vpop.f32.mrb[0].mxu0
  %v137 = vadd.f32 %v53, %v136
  %v138 = vpop.f32.mrb[0].mxu0
  %v139 = vadd.f32 %v49, %v138
  %v140 = vpop.f32.mrb[0].mxu0
  %v141 = vadd.f32 %v53, %v140
  %142 = vdwg.mxu0
  %v143 = vmax.f32 %v135, 0.0
  %v144 = vmax.f32 %v137, 0.0
  %v145 = vmax.f32 %v139, 0.0
  %v146 = vmax.f32 %v141, 0.0
  %v147 = vpack.c.bf16 %v145, %v143
  %v148 = vpack.c.bf16 %v146, %v144
  %v149 = vld [vmem:[%s3] sm:$0xf]
  %v150 = vld [vmem:[%s3 + $0x4] sm:$0xf]
  %v151 = vld [vmem:[%s3 + $0x8] sm:$0xf]
  %v152 = vld [vmem:[%s3 + $0xc] sm:$0xf]
  %v153 = vld [vmem:[%s3 + $0x10] sm:$0xf]
  %v154 = vld [vmem:[%s3 + $0x14] sm:$0xf]
  %v155 = vld [vmem:[%s3 + $0x18] sm:$0xf]
  %v156 = vld [vmem:[%s3 + $0x1c] sm:$0xf]
  %v157 = vld [vmem:[%s3 + $0x20] sm:$0xf]
  %v158 = vld [vmem:[%s3 + $0x24] sm:$0xf]
  %v159 = vld [vmem:[%s3 + $0x28] sm:$0xf]
  %v160 = vld [vmem:[%s3 + $0x2c] sm:$0xf]
  %v161 = vld [vmem:[%s3 + $0x30] sm:$0xf]
  %v162 = vld [vmem:[%s3 + $0x34] sm:$0xf]
  %v163 = vld [vmem:[%s3 + $0x38] sm:$0xf]
  %v164 = vld [vmem:[%s3 + $0x3c] sm:$0xf]
  %v165 = vld [vmem:[%s3 + $0x40] sm:$0xf]
  %v166 = vld [vmem:[%s3 + $0x44] sm:$0xf]
  %v167 = vld [vmem:[%s3 + $0x48] sm:$0xf]
  %v168 = vld [vmem:[%s3 + $0x4c] sm:$0xf]
  %v169 = vld [vmem:[%s3 + $0x50] sm:$0xf]
  %v170 = vld [vmem:[%s3 + $0x54] sm:$0xf]
  %v171 = vld [vmem:[%s3 + $0x58] sm:$0xf]
  %v172 = vld [vmem:[%s3 + $0x5c] sm:$0xf]
  %v173 = vld [vmem:[%s3 + $0x60] sm:$0xf]
  %v174 = vld [vmem:[%s3 + $0x64] sm:$0xf]
  %v175 = vld [vmem:[%s3 + $0x68] sm:$0xf]
  %v176 = vld [vmem:[%s3 + $0x6c] sm:$0xf]
  %v177 = vld [vmem:[%s3 + $0x70] sm:$0xf]
  %v178 = vld [vmem:[%s3 + $0x74] sm:$0xf]
  %v179 = vld [vmem:[%s3 + $0x78] sm:$0xf]
  %v180 = vld [vmem:[%s3 + $0x7c] sm:$0xf]
  %v181 = vld [vmem:[%s4] sm:$0x1]
  %v183 = vlaneseq
  %v184 = vshrl.u32 %v183, 7
  %v185 = vsub.s32 0, %v184
  %v186 = vrot.slane %v181, %v185
  %v220 = vunpack.c.l.b16 %v149
  %v221 = vunpack.c.l.b16 %v150
  %v222 = vunpack.c.l.b16 %v151
  %v223 = vunpack.c.l.b16 %v152
  %v224 = vunpack.c.l.b16 %v153
  %v225 = vunpack.c.l.b16 %v154
  %v226 = vunpack.c.l.b16 %v155
  %v227 = vunpack.c.l.b16 %v156
  %v228 = vunpack.c.l.b16 %v157
  %v229 = vunpack.c.l.b16 %v158
  %v230 = vunpack.c.l.b16 %v159
  %v231 = vunpack.c.l.b16 %v160
  %v232 = vunpack.c.l.b16 %v161
  %v233 = vunpack.c.l.b16 %v162
  %v234 = vunpack.c.l.b16 %v163
  %v235 = vunpack.c.l.b16 %v164
  %v236 = vunpack.c.l.b16 %v165
  %v237 = vunpack.c.l.b16 %v166
  %v238 = vunpack.c.l.b16 %v167
  %v239 = vunpack.c.l.b16 %v168
  %v240 = vunpack.c.l.b16 %v169
  %v241 = vunpack.c.l.b16 %v170
  %v242 = vunpack.c.l.b16 %v171
  %v243 = vunpack.c.l.b16 %v172
  %v244 = vunpack.c.l.b16 %v173
  %v245 = vunpack.c.l.b16 %v174
  %v246 = vunpack.c.l.b16 %v175
  %v247 = vunpack.c.l.b16 %v176
  %v248 = vunpack.c.l.b16 %v177
  %v249 = vunpack.c.l.b16 %v178
  %v250 = vunpack.c.l.b16 %v179
  %v251 = vunpack.c.l.b16 %v180
  %v252 = vpack.c.b16 %v221, %v220
  %v253 = vpack.c.b16 %v223, %v222
  %v254 = vpack.c.b16 %v225, %v224
  %v255 = vpack.c.b16 %v227, %v226
  %v256 = vpack.c.b16 %v229, %v228
  %v257 = vpack.c.b16 %v231, %v230
  %v258 = vpack.c.b16 %v233, %v232
  %v259 = vpack.c.b16 %v235, %v234
  %v260 = vpack.c.b16 %v237, %v236
  %v261 = vpack.c.b16 %v239, %v238
  %v262 = vpack.c.b16 %v241, %v240
  %v263 = vpack.c.b16 %v243, %v242
  %v264 = vpack.c.b16 %v245, %v244
  %v265 = vpack.c.b16 %v247, %v246
  %v266 = vpack.c.b16 %v249, %v248
  %v267 = vpack.c.b16 %v251, %v250
  %284 = vmatprep.subr.bf16.mxu0 0
  %285 = vmatpush1.bf16.msra.mxu0 %v252
  %286 = vmatprep.subr.bf16.mxu0 0
  %287 = vmatpush1.bf16.msra.mxu0 %v253
  %288 = vmatprep.subr.bf16.mxu0 0
  %289 = vmatpush1.bf16.msra.mxu0 %v254
  %290 = vmatprep.subr.bf16.mxu0 0
  %291 = vmatpush1.bf16.msra.mxu0 %v255
  %292 = vmatprep.subr.bf16.mxu0 0
  %293 = vmatpush1.bf16.msra.mxu0 %v256
  %294 = vmatprep.subr.bf16.mxu0 0
  %295 = vmatpush1.bf16.msra.mxu0 %v257
  %296 = vmatprep.subr.bf16.mxu0 0
  %297 = vmatpush1.bf16.msra.mxu0 %v258
  %298 = vmatprep.subr.bf16.mxu0 0
  %299 = vmatpush1.bf16.msra.mxu0 %v259
  %300 = vmatprep.subr.bf16.mxu0 0
  %301 = vmatpush1.bf16.msra.mxu0 %v260
  %302 = vmatprep.subr.bf16.mxu0 0
  %303 = vmatpush1.bf16.msra.mxu0 %v261
  %304 = vmatprep.subr.bf16.mxu0 0
  %305 = vmatpush1.bf16.msra.mxu0 %v262
  %306 = vmatprep.subr.bf16.mxu0 0
  %307 = vmatpush1.bf16.msra.mxu0 %v263
  %308 = vmatprep.subr.bf16.mxu0 0
  %309 = vmatpush1.bf16.msra.mxu0 %v264
  %310 = vmatprep.subr.bf16.mxu0 0
  %311 = vmatpush1.bf16.msra.mxu0 %v265
  %312 = vmatprep.subr.bf16.mxu0 0
  %313 = vmatpush1.bf16.msra.mxu0 %v266
  %314 = vmatprep.subr.bf16.mxu0 0
  %315 = vmatpush1.bf16.msra.mxu0 %v267
  %316 = vmatprep.mubr.bf16.mxu0 %v148
  %317 = vmatmul.mubr.bf16.gmra.mrb[0].mxu0 %v147
  %v318 = vpop.f32.mrb[0].mxu0
  %v319 = vadd.f32 %v186, %v318
  %v320 = vpop.f32.mrb[0].mxu0
  %v321 = vpop.f32.mrb[0].mxu0
  %v322 = vadd.f32 %v186, %v321
  %v323 = vpop.f32.mrb[0].mxu0
  %324 = vdwg.mxu0
  %v325 = vmax.f32 %v319, 0.0
  %v326 = vmax.f32 %v322, 0.0
  %v327 = vpack.c.bf16 %v326, %v325
  %v328 = vld [vmem:[%s5] sm:$0xf]
  %v329 = vld [vmem:[%s5 + $0x4] sm:$0xf]
  %v330 = vld [vmem:[%s5 + $0x8] sm:$0xf]
  %v331 = vld [vmem:[%s5 + $0xc] sm:$0xf]
  %v332 = vld [vmem:[%s5 + $0x10] sm:$0xf]
  %v333 = vld [vmem:[%s5 + $0x14] sm:$0xf]
  %v334 = vld [vmem:[%s5 + $0x18] sm:$0xf]
  %v335 = vld [vmem:[%s5 + $0x1c] sm:$0xf]
  %v336 = vld [vmem:[%s6] sm:$0x1]
  %v338 = vlaneseq
  %v339 = vshrl.u32 %v338, 7
  %v340 = vsub.s32 0, %v339
  %v341 = vrot.slane %v336, %v340
  %v351 = vunpack.c.l.b16 %v328
  %v352 = vunpack.c.l.b16 %v329
  %v353 = vunpack.c.l.b16 %v330
  %v354 = vunpack.c.l.b16 %v331
  %v355 = vunpack.c.l.b16 %v332
  %v356 = vunpack.c.l.b16 %v333
  %v357 = vunpack.c.l.b16 %v334
  %v358 = vunpack.c.l.b16 %v335
  %v359 = vpack.c.b16 %v352, %v351
  %v360 = vpack.c.b16 %v354, %v353
  %v361 = vpack.c.b16 %v356, %v355
  %v362 = vpack.c.b16 %v358, %v357
  %v368 = vsel %vm96, %v327, 0
  %370 = vmatprep.subr.bf16.mxu0 0
  %371 = vmatpush1.bf16.msra.mxu0 %v359
  %372 = vmatprep.subr.bf16.mxu0 0
  %373 = vmatpush1.bf16.msra.mxu0 %v360
  %374 = vmatprep.subr.bf16.mxu0 0
  %375 = vmatpush1.bf16.msra.mxu0 %v361
  %376 = vmatprep.subr.bf16.mxu0 0
  %377 = vmatpush1.bf16.msra.mxu0 %v362
  %378 = vmatprep.subr.bf16.mxu0 0
  %379 = vmatpush1.bf16.msra.mxu0 0
  %380 = vmatprep.subr.bf16.mxu0 0
  %381 = vmatpush1.bf16.msra.mxu0 0
  %382 = vmatprep.subr.bf16.mxu0 0
  %383 = vmatpush1.bf16.msra.mxu0 0
  %384 = vmatprep.subr.bf16.mxu0 0
  %385 = vmatpush1.bf16.msra.mxu0 0
  %386 = vmatprep.subr.bf16.mxu0 0
  %387 = vmatpush1.bf16.msra.mxu0 0
  %388 = vmatprep.subr.bf16.mxu0 0
  %389 = vmatpush1.bf16.msra.mxu0 0
  %390 = vmatprep.subr.bf16.mxu0 0
  %391 = vmatpush1.bf16.msra.mxu0 0
  %392 = vmatprep.subr.bf16.mxu0 0
  %393 = vmatpush1.bf16.msra.mxu0 0
  %394 = vmatprep.subr.bf16.mxu0 0
  %395 = vmatpush1.bf16.msra.mxu0 0
  %396 = vmatprep.subr.bf16.mxu0 0
  %397 = vmatpush1.bf16.msra.mxu0 0
  %398 = vmatprep.subr.bf16.mxu0 0
  %399 = vmatpush1.bf16.msra.mxu0 0
  %400 = vmatprep.subr.bf16.mxu0 0
  %401 = vmatpush1.bf16.msra.mxu0 0
  %402 = vmatprep.mubr.bf16.mxu0 0
  %403 = vmatmul.mubr.bf16.gmra.mrb[0].mxu0 %v368
  %v404 = vpop.f32.mrb[0].mxu0
  %v405 = vadd.f32 %v341, %v404
  %v406 = vpop.f32.mrb[0].mxu0
  %v407 = vpop.f32.mrb[0].mxu0
  %v408 = vadd.f32 %v341, %v407
  %v409 = vpop.f32.mrb[0].mxu0
  %410 = vdwg.mxu0
  %v411 = vmax.f32 %v405, 0.0
  %v412 = vmax.f32 %v408, 0.0
  %v413 = vpack.c.bf16 %v412, %v411
  %v414 = vld [vmem:[%s7] sm:$0xf]
  %v415 = vld [vmem:[%s7 + $0x4] sm:$0xf]
  %v416 = vld [vmem:[%s7 + $0x8] sm:$0xf]
  %v417 = vld [vmem:[%s7 + $0xc] sm:$0xf]
  %v418 = vld [vmem:[%s7 + $0x10] sm:$0xf]
  %v419 = vld [vmem:[%s7 + $0x14] sm:$0xf]
  %v420 = vld [vmem:[%s7 + $0x18] sm:$0xf]
  %v421 = vld [vmem:[%s7 + $0x1c] sm:$0xf]
  %v422 = vld [vmem:[%s7 + $0x20] sm:$0xf]
  %v423 = vld [vmem:[%s7 + $0x24] sm:$0xf]
  %v424 = vld [vmem:[%s7 + $0x28] sm:$0xf]
  %v425 = vld [vmem:[%s7 + $0x2c] sm:$0xf]
  %v426 = vld [vmem:[%s7 + $0x30] sm:$0xf]
  %v427 = vld [vmem:[%s7 + $0x34] sm:$0xf]
  %v428 = vld [vmem:[%s7 + $0x38] sm:$0xf]
  %v429 = vld [vmem:[%s7 + $0x3c] sm:$0xf]
  %v430 = vld [vmem:[%s8] sm:$0x1]
  %v432 = vlaneseq
  %v433 = vshrl.u32 %v432, 7
  %v434 = vsub.s32 0, %v433
  %v435 = vrot.slane %v430, %v434
  %v453 = vunpack.c.l.b16 %v414
  %v454 = vunpack.c.l.b16 %v415
  %v455 = vunpack.c.l.b16 %v416
  %v456 = vunpack.c.l.b16 %v417
  %v457 = vunpack.c.l.b16 %v418
  %v458 = vunpack.c.l.b16 %v419
  %v459 = vunpack.c.l.b16 %v420
  %v460 = vunpack.c.l.b16 %v421
  %v461 = vunpack.c.l.b16 %v422
  %v462 = vunpack.c.l.b16 %v423
  %v463 = vunpack.c.l.b16 %v424
  %v464 = vunpack.c.l.b16 %v425
  %v465 = vunpack.c.l.b16 %v426
  %v466 = vunpack.c.l.b16 %v427
  %v467 = vunpack.c.l.b16 %v428
  %v468 = vunpack.c.l.b16 %v429
  %v469 = vpack.c.b16 %v454, %v453
  %v470 = vpack.c.b16 %v456, %v455
  %v471 = vpack.c.b16 %v458, %v457
  %v472 = vpack.c.b16 %v460, %v459
  %v473 = vpack.c.b16 %v462, %v461
  %v474 = vpack.c.b16 %v464, %v463
  %v475 = vpack.c.b16 %v466, %v465
  %v476 = vpack.c.b16 %v468, %v467
  %485 = vmatprep.subr.bf16.mxu0 0
  %486 = vmatpush1.bf16.msra.mxu0 %v469
  %487 = vmatprep.subr.bf16.mxu0 0
  %488 = vmatpush1.bf16.msra.mxu0 %v470
  %489 = vmatprep.subr.bf16.mxu0 0
  %490 = vmatpush1.bf16.msra.mxu0 %v471
  %491 = vmatprep.subr.bf16.mxu0 0
  %492 = vmatpush1.bf16.msra.mxu0 %v472
  %493 = vmatprep.subr.bf16.mxu0 0
  %494 = vmatpush1.bf16.msra.mxu0 %v473
  %495 = vmatprep.subr.bf16.mxu0 0
  %496 = vmatpush1.bf16.msra.mxu0 %v474
  %497 = vmatprep.subr.bf16.mxu0 0
  %498 = vmatpush1.bf16.msra.mxu0 %v475
  %499 = vmatprep.subr.bf16.mxu0 0
  %500 = vmatpush1.bf16.msra.mxu0 %v476
  %501 = vmatprep.subr.bf16.mxu0 0
  %502 = vmatpush1.bf16.msra.mxu0 0
  %503 = vmatprep.subr.bf16.mxu0 0
  %504 = vmatpush1.bf16.msra.mxu0 0
  %505 = vmatprep.subr.bf16.mxu0 0
  %506 = vmatpush1.bf16.msra.mxu0 0
  %507 = vmatprep.subr.bf16.mxu0 0
  %508 = vmatpush1.bf16.msra.mxu0 0
  %509 = vmatprep.subr.bf16.mxu0 0
  %510 = vmatpush1.bf16.msra.mxu0 0
  %511 = vmatprep.subr.bf16.mxu0 0
  %512 = vmatpush1.bf16.msra.mxu0 0
  %513 = vmatprep.subr.bf16.mxu0 0
  %514 = vmatpush1.bf16.msra.mxu0 0
  %515 = vmatprep.subr.bf16.mxu0 0
  %516 = vmatpush1.bf16.msra.mxu0 0
  %517 = vmatprep.mubr.bf16.mxu0 0
  %518 = vmatmul.mubr.bf16.gmra.mrb[0].mxu0 %v413
  %v519 = vpop.f32.mrb[0].mxu0
  %v520 = vadd.f32 %v435, %v519
  %v521 = vpop.f32.mrb[0].mxu0
  %v522 = vpop.f32.mrb[0].mxu0
  %v523 = vadd.f32 %v435, %v522
  %v524 = vpop.f32.mrb[0].mxu0
  %525 = vdwg.mxu0
  %v526 = vpack.c.bf16 %v523, %v520
  %v528 = vunpack.c.l.b16 %v526
  %v529 = vunpack.c.h.b16 %v526
  %v530 = vpack.c.b16 %v528, %v528
  %v531 = vpack.c.b16 %v529, %v529
  %534 = vst [vmem:[%s9] sm:$0xf] %v530
  %535 = vst [vmem:[%s9 + $0x4] sm:$0xf] %v531
  // Predicated region
  $region38: #{simple_predictor_forward.1} parent=0 // pred_check
    _
  $region39: #{simple_predictor_forward.1} parent=0 // pred_check_branch
    %537 = sbr.rel (0) target = $region41
  $region40: #{simple_predictor_forward.1} parent=0 // pred_region
    _
  $region41: #{simple_predictor_forward.1} parent=0 // pred_fallthru
    _
  // Predicated region
  $region42: #{simple_predictor_forward.1} parent=0 // pred_check
    _
  $region43: #{simple_predictor_forward.1} parent=0 // pred_check_branch
    %539 = sbr.rel (0) target = $region45
  $region44: #{simple_predictor_forward.1} parent=0 // pred_region
    _
  $region45: #{simple_predictor_forward.1} parent=0 // pred_fallthru
    _

</llo_original>
